<compile_context>
chip_gen: v7x
topology: tpu7x:2x2x1
jax: 0.10.0
libtpu: 0.0.40
codegen_flags: <defaults>
</compile_context>

<pallas_src>
import jax
import jax.numpy as jnp
from jax.experimental import pallas as pl
from jax.experimental.pallas import tpu as pltpu

_LANE = 128


def outconv_kernel(x_ref, w1_ref, b1_ref, w2_ref, b2_ref, o_ref):
    # x_ref : (NB, C_in, TILE)   NB batch rows x one lane-dense spatial tile
    # w1_ref: (C_in, C_in)       BN-folded conv1 weight
    # b1_ref: (C_in, 1)          BN-folded conv1 bias
    # w2_ref: (C_out, C_in)      conv2 weight
    # b2_ref: (C_out, 1)         conv2 bias
    # o_ref : (NB, C_out, TILE)
    w1 = w1_ref[...]
    b1 = b1_ref[...]
    w2 = w2_ref[...]
    b2 = b2_ref[...]
    nb = x_ref.shape[0]
    # Static unroll over the (small, capped) batch rows in this block; keeps
    # every matmul a plain 2D (C, TILE) tile with the lane axis untouched.
    for b in range(nb):
        x = x_ref[b].astype(jnp.float32)   # upcast right after load (v5e-safe)
        h = jnp.dot(w1, x, preferred_element_type=jnp.float32)
        h = jnp.maximum(h + b1, 0.0)       # folded bias + ReLU
        y = jnp.dot(w2, h, preferred_element_type=jnp.float32)
        o_ref[b] = (y + b2).astype(o_ref.dtype)


def _round_up(x, m):
    return ((x + m - 1) // m) * m


def _largest_divisor_leq(n, k):
    k = max(1, min(n, k))
    while n % k:
        k -= 1
    return k


def _choose_blocking(N, HW, C_in, C_out, itemsize, desired_lanes):
    """Pick (nb, tile, hw_pad): batch rows per step, lane tile, padded HW."""
    hw_pad = max(_round_up(HW, _LANE), _LANE)

    # VMEM clamp: double-buffered (in + out) per step <= ~24 MiB (v7x-safe).
    max_lanes = (24 << 20) // (2 * (C_in + C_out) * itemsize)
    max_lanes = max(_LANE, (max_lanes // _LANE) * _LANE)
    desired = max(_LANE, min((desired_lanes // _LANE) * _LANE, max_lanes))

    if hw_pad <= desired:
        # Whole spatial extent in one tile; fatten the step with batch rows.
        tile = hw_pad
        nb_cap = min(16, max(1, desired // tile))   # cap static unroll length
        nb = _largest_divisor_leq(N, nb_cap)
    else:
        nb = 1
        tile = desired
        hw_pad = _round_up(hw_pad, tile)

    # Keep >= 2 grid steps so v7x's second TensorCore is not idle.
    if (N // nb) * (hw_pad // tile) < 2:
        if nb > 1:
            nb = _largest_divisor_leq(N, nb // 2)
        elif tile == hw_pad and hw_pad >= 2 * _LANE:
            tile = _round_up(hw_pad // 2, _LANE)
            hw_pad = 2 * tile
    return nb, tile, hw_pad


def outconv_forward(x_nchw, params, *, desired_lanes=65536, io_dtype=None):
    """x_nchw: (N, C_in, H, W). Returns (N, C_out, H, W) in io_dtype (default: x dtype)."""
    w1, b1, gamma, beta, run_mean, run_var, w2, b2, eps = params
    N, C_in, H, W = x_nchw.shape
    C_out = w2.shape[0]
    HW = H * W

    io_dtype = x_nchw.dtype if io_dtype is None else jnp.dtype(io_dtype)
    itemsize = jnp.dtype(io_dtype).itemsize

    # 1x1 conv kernels as (out_ch, in_ch) matmul operands for W @ X layout.
    w1_mat = w1[:, :, 0, 0].astype(jnp.float32)            # (C_in, C_in)
    w2_mat = w2[:, :, 0, 0].astype(jnp.float32)            # (C_out, C_in)

    # Fold eval-mode BatchNorm (per-channel affine) + conv1 bias into conv1.
    inv_std = 1.0 / jnp.sqrt(run_var.astype(jnp.float32) + eps)
    scale = gamma * inv_std                                  # (C_in,)
    shift = beta - run_mean * scale                          # (C_in,)
    w1_fold = w1_mat * scale[:, None]
    b1_fold = (b1 * scale + shift).reshape(C_in, 1).astype(jnp.float32)
    b2_col = b2.reshape(C_out, 1).astype(jnp.float32)

    nb, tile, hw_pad = _choose_blocking(N, HW, C_in, C_out, itemsize, desired_lanes)

    # Free reshape (no transpose): stay NCHW, spatial flattened onto lanes.
    x3 = x_nchw.reshape(N, C_in, HW).astype(io_dtype)
    if hw_pad != HW:
        # Pad lanes to a multiple of the tile; padded columns are sliced off
        # after the kernel, so their garbage values never escape.
        x3 = jnp.pad(x3, ((0, 0), (0, 0), (0, hw_pad - HW)))

    grid = (N // nb, hw_pad // tile)

    # Advisory cost estimate: 2 matmuls of K=C_in over every pixel; traffic is
    # essentially the activations in + activations out (weights negligible).
    flops = 2 * N * HW * C_in * (C_in + C_out)
    bytes_accessed = itemsize * N * HW * (C_in + C_out) + 4 * (
        C_in * C_in + C_out * C_in + C_in + C_out)

    step_bytes = 2 * nb * (C_in + C_out) * tile * itemsize   # double-buffered in+out
    vmem_limit = int(min(48 << 20, max(16 << 20, step_bytes + (4 << 20))))

    out = pl.pallas_call(
        outconv_kernel,
        out_shape=jax.ShapeDtypeStruct((N, C_out, hw_pad), io_dtype),
        grid_spec=pltpu.PrefetchScalarGridSpec(
            num_scalar_prefetch=0,
            grid=grid,
            in_specs=[
                pl.BlockSpec((nb, C_in, tile), lambda n, t: (n, 0, t)),   # x tile
                pl.BlockSpec((C_in, C_in),     lambda n, t: (0, 0)),      # w1 (BN-folded)
                pl.BlockSpec((C_in, 1),        lambda n, t: (0, 0)),      # b1 (BN-folded)
                pl.BlockSpec((C_out, C_in),    lambda n, t: (0, 0)),      # w2
                pl.BlockSpec((C_out, 1),       lambda n, t: (0, 0)),      # b2
            ],
            out_specs=pl.BlockSpec((nb, C_out, tile), lambda n, t: (n, 0, t)),
        ),
        compiler_params=pltpu.CompilerParams(
            dimension_semantics=("parallel", "parallel"),
            vmem_limit_bytes=vmem_limit,
        ),
        cost_estimate=pl.CostEstimate(
            flops=flops, transcendentals=0, bytes_accessed=bytes_accessed),
    )(x3, w1_fold, b1_fold, w2_mat, b2_col)

    if hw_pad != HW:
        out = out[:, :, :HW]
    return out.reshape(N, C_out, H, W)


def init_params(key, in_channels, out_channels):
    k1, k2, k3, k4, k5, k6, k7, k8 = jax.random.split(key, 8)
    # Conv2d(in, in, 1)
    w1 = jax.random.normal(k1, (in_channels, in_channels, 1, 1), jnp.float32) * 0.1
    b1 = jax.random.normal(k2, (in_channels,), jnp.float32) * 0.1
    # BatchNorm2d(in) parameters + running stats (eval mode)
    gamma = 1.0 + 0.1 * jax.random.normal(k3, (in_channels,), jnp.float32)
    beta = 0.1 * jax.random.normal(k4, (in_channels,), jnp.float32)
    run_mean = 0.05 * jax.random.normal(k7, (in_channels,), jnp.float32)
    run_var = 1.0 + 0.1 * jax.random.uniform(k8, (in_channels,), jnp.float32)
    # Conv2d(in, out, 1)
    w2 = jax.random.normal(k5, (out_channels, in_channels, 1, 1), jnp.float32) * 0.1
    b2 = jax.random.normal(k6, (out_channels,), jnp.float32) * 0.1
    eps = 1e-5
    return (w1, b1, gamma, beta, run_mean, run_var, w2, b2, eps)


def reference_forward(x_nchw, params):
    """Pure-JAX reference matching the PyTorch module (eval-mode BN)."""
    w1, b1, gamma, beta, run_mean, run_var, w2, b2, eps = params
    h = jnp.einsum('nchw,oc->nohw', x_nchw, w1[:, :, 0, 0]) + b1[None, :, None, None]
    h = (h - run_mean[None, :, None, None]) / jnp.sqrt(run_var + eps)[None, :, None, None]
    h = h * gamma[None, :, None, None] + beta[None, :, None, None]
    h = jnp.maximum(h, 0.0)
    y = jnp.einsum('nchw,oc->nohw', h, w2[:, :, 0, 0]) + b2[None, :, None, None]
    return y


if __name__ == "__main__":
    key = jax.random.PRNGKey(0)
    kx, kp = jax.random.split(key)

    N, C_in, C_out, H, W = 2, 8, 4, 16, 16
    x = jax.random.normal(kx, (N, C_in, H, W), jnp.float32)
    params = init_params(kp, C_in, C_out)

    # f32 path: must match the PyTorch/JAX reference tightly.
    out = jax.block_until_ready(outconv_forward(x, params))
    ref = reference_forward(x, params)
    assert out.shape == (N, C_out, H, W)
    assert jnp.allclose(out, ref, atol=1e-4, rtol=1e-4), \
        f"f32 max err {jnp.max(jnp.abs(out - ref))}"

    # Awkward spatial size: exercises the lane padding + output slice path.
    x_odd = jax.random.normal(kx, (N, C_in, 15, 15), jnp.float32)
    out_odd = jax.block_until_ready(outconv_forward(x_odd, params))
    ref_odd = reference_forward(x_odd, params)
    assert out_odd.shape == (N, C_out, 15, 15)
    assert jnp.allclose(out_odd, ref_odd, atol=1e-4, rtol=1e-4), \
        f"padded max err {jnp.max(jnp.abs(out_odd - ref_odd))}"

    # Optional bf16 I/O path (halves HBM traffic on this memory-bound kernel).
    out_bf16 = jax.block_until_ready(
        outconv_forward(x, params, io_dtype=jnp.bfloat16))
    x_q = x.astype(jnp.bfloat16).astype(jnp.float32)
    ref_bf16 = reference_forward(x_q, params)
    assert jnp.allclose(out_bf16.astype(jnp.float32), ref_bf16, atol=3e-2, rtol=3e-2), \
        f"bf16 max err {jnp.max(jnp.abs(out_bf16.astype(jnp.float32) - ref_bf16))}"

    print("KERNEL_OK")
</pallas_src>

<mosaic_0001>
module attributes {stable_mosaic.version = 11 : i64} {
  func.func @outconv_kernel(%arg0: i32, %arg1: i32, %arg2: memref<1x8x256xf32, #tpu.memory_space<vmem>>, %arg3: memref<8x8xf32, #tpu.memory_space<vmem>>, %arg4: memref<8x1xf32, #tpu.memory_space<vmem>>, %arg5: memref<4x8xf32, #tpu.memory_space<vmem>>, %arg6: memref<4x1xf32, #tpu.memory_space<vmem>>, %arg7: memref<1x4x256xf32, #tpu.memory_space<vmem>>) attributes {dimension_semantics = [#tpu.dimension_semantics<parallel>, #tpu.dimension_semantics<parallel>], iteration_bounds = array<i64: 2, 1>, scalar_prefetch = 0 : i64, scratch_operands = 0 : i64, tpu.core_type = #tpu.core_type<tc>, window_params = [{transform_indices = @transform_0, window_bounds = array<i64: 1, 8, 256>}, {pipeline_mode = #tpu.pipeline_mode<synchronous>, transform_indices = @transform_1, window_bounds = array<i64: 8, 8>}, {pipeline_mode = #tpu.pipeline_mode<synchronous>, transform_indices = @transform_2, window_bounds = array<i64: 8, 1>}, {pipeline_mode = #tpu.pipeline_mode<synchronous>, transform_indices = @transform_3, window_bounds = array<i64: 4, 8>}, {pipeline_mode = #tpu.pipeline_mode<synchronous>, transform_indices = @transform_4, window_bounds = array<i64: 4, 1>}, {transform_indices = @transform_5, window_bounds = array<i64: 1, 4, 256>}]} {
    %c0 = arith.constant 0 : index
    %c0_0 = arith.constant 0 : index
    %0 = vector.load %arg3[%c0, %c0_0] : memref<8x8xf32, #tpu.memory_space<vmem>>, vector<8x8xf32>
    %c0_1 = arith.constant 0 : index
    %c0_2 = arith.constant 0 : index
    %1 = vector.load %arg4[%c0_1, %c0_2] : memref<8x1xf32, #tpu.memory_space<vmem>>, vector<8x1xf32>
    %c0_3 = arith.constant 0 : index
    %c0_4 = arith.constant 0 : index
    %2 = vector.load %arg5[%c0_3, %c0_4] : memref<4x8xf32, #tpu.memory_space<vmem>>, vector<4x8xf32>
    %c0_5 = arith.constant 0 : index
    %c0_6 = arith.constant 0 : index
    %3 = vector.load %arg6[%c0_5, %c0_6] : memref<4x1xf32, #tpu.memory_space<vmem>>, vector<4x1xf32>
    %c0_7 = arith.constant 0 : index
    %c0_8 = arith.constant 0 : index
    %c0_9 = arith.constant 0 : index
    %4 = vector.load %arg2[%c0_7, %c0_8, %c0_9] : memref<1x8x256xf32, #tpu.memory_space<vmem>>, vector<1x8x256xf32>
    %5 = vector.shape_cast %4 : vector<1x8x256xf32> to vector<8x256xf32>
    %cst = arith.constant dense<0.000000e+00> : vector<8x256xf32>
    %6 = tpu.matmul %0, %5, %cst {dimension_numbers = #tpu.dot_dimension_numbers<[1], [0], [0], [1], [0, 0, 1, 1], [], []>} : vector<8x8xf32>, vector<8x256xf32>, vector<8x256xf32> -> vector<8x256xf32>
    %7 = vector.broadcast %1 : vector<8x1xf32> to vector<8x256xf32>
    %8 = arith.addf %6, %7 : vector<8x256xf32>
    %cst_10 = arith.constant 0.000000e+00 : f32
    %9 = vector.broadcast %cst_10 : f32 to vector<8x256xf32>
    %10 = arith.maximumf %8, %9 : vector<8x256xf32>
    %cst_11 = arith.constant dense<0.000000e+00> : vector<4x256xf32>
    %11 = tpu.matmul %2, %10, %cst_11 {dimension_numbers = #tpu.dot_dimension_numbers<[1], [0], [0], [1], [0, 0, 1, 1], [], []>} : vector<4x8xf32>, vector<8x256xf32>, vector<4x256xf32> -> vector<4x256xf32>
    %12 = vector.broadcast %3 : vector<4x1xf32> to vector<4x256xf32>
    %13 = arith.addf %11, %12 : vector<4x256xf32>
    %c0_12 = arith.constant 0 : index
    %c0_13 = arith.constant 0 : index
    %c0_14 = arith.constant 0 : index
    %14 = vector.load %arg7[%c0_12, %c0_13, %c0_14] : memref<1x4x256xf32, #tpu.memory_space<vmem>>, vector<1x4x256xf32>
    %15 = vector.shape_cast %14 : vector<1x4x256xf32> to vector<4x256xf32>
    %16 = vector.shape_cast %13 : vector<4x256xf32> to vector<1x4x256xf32>
    tpu.vector_store %arg7[%c0_12, %c0_13, %c0_14], %16 {strides = array<i32>} : memref<1x4x256xf32, #tpu.memory_space<vmem>>, vector<1x4x256xf32>,
    return
  }
  func.func @transform_0(%arg0: i32, %arg1: i32) -> (i32, i32, i32) {
    %c0_i32 = arith.constant 0 : i32
    %c0_i32_0 = arith.constant 0 : i32
    return %arg0, %c0_i32, %arg1 : i32, i32, i32
  }
  func.func @transform_1(%arg0: i32, %arg1: i32) -> (i32, i32) {
    %c0_i32 = arith.constant 0 : i32
    %c0_i32_0 = arith.constant 0 : i32
    %c0_i32_1 = arith.constant 0 : i32
    return %c0_i32, %c0_i32_0 : i32, i32
  }
  func.func @transform_2(%arg0: i32, %arg1: i32) -> (i32, i32) {
    %c0_i32 = arith.constant 0 : i32
    %c0_i32_0 = arith.constant 0 : i32
    %c0_i32_1 = arith.constant 0 : i32
    return %c0_i32, %c0_i32_0 : i32, i32
  }
  func.func @transform_3(%arg0: i32, %arg1: i32) -> (i32, i32) {
    %c0_i32 = arith.constant 0 : i32
    %c0_i32_0 = arith.constant 0 : i32
    %c0_i32_1 = arith.constant 0 : i32
    return %c0_i32, %c0_i32_0 : i32, i32
  }
  func.func @transform_4(%arg0: i32, %arg1: i32) -> (i32, i32) {
    %c0_i32 = arith.constant 0 : i32
    %c0_i32_0 = arith.constant 0 : i32
    %c0_i32_1 = arith.constant 0 : i32
    return %c0_i32, %c0_i32_0 : i32, i32
  }
  func.func @transform_5(%arg0: i32, %arg1: i32) -> (i32, i32, i32) {
    %c0_i32 = arith.constant 0 : i32
    %c0_i32_0 = arith.constant 0 : i32
    return %arg0, %c0_i32, %arg1 : i32, i32, i32
  }
}

</mosaic_0001>

<llo_original>
// kernel: tpu_custom_call.1
$region0: #{tpu_custom_call.1}
  #allocation0 [shape = 'u32[]', space=smem, size = 0x4, offset = 0x4, fixed_abs, tag = 'smem constant byte address 0x4 - core index']
  #allocation1 [shape = 'u32[144,128]{1,0:T(1,128)}', space=vmem, size = 0x12000, scoped, tag = 'internal scratch']
  %s0 = inlined_call_operand.hbm [shape: f32[2,8,256], index: 0, kind: input, shape index: {}]
  %s1 = inlined_call_operand.vmem [shape: f32[8,8], index: 1, kind: input, shape index: {}]
  %s2 = inlined_call_operand.vmem [shape: f32[8,1], index: 2, kind: input, shape index: {}]
  %s3 = inlined_call_operand.vmem [shape: f32[4,8], index: 3, kind: input, shape index: {}]
  %s4 = inlined_call_operand.vmem [shape: f32[4,1], index: 4, kind: input, shape index: {}]
  %s5 = inlined_call_operand.hbm [shape: f32[2,4,256], index: 5, kind: output, shape index: {}]
  %s6 = sld [smem:[#allocation0]]
  $region57: #{tpu_custom_call.1} parent=0
    _
  %s8 = ssub.s32 1, %s6
  %s9 = scalar_select 0, %s8, %s6
  $region1: #{tpu_custom_call.1} parent=0
    #allocation2 [shape = 'u8[16384]{0}', space=vmem, size = 0x4000, scoped, tag = 'input window, operand 0']
    #allocation3 [shape = 's32[2]{0}', space=sflag, size = 0x8, scoped, tag = 'scoped memory for tpu_custom_call.1']
    #allocation4 [shape = 's32[2]{0}', space=sflag, size = 0x8, scoped, tag = 'scoped memory for tpu_custom_call.1']
    #allocation5 [shape = 'u8[8192]{0}', space=vmem, size = 0x2000, scoped, tag = 'output window, operand 0']
    %10 = vsyncpa [#allocation3], 0
    %s11 = scalar_lea.sflag [#allocation3], 1
    %12 = vsyncpa %s11, 0
    %13 = vsyncpa [#allocation4], 0
    %s14 = scalar_lea.sflag [#allocation4], 1
    %15 = vsyncpa %s14, 0
    loop: start=0, step=1, limit=4
    $region2: #{tpu_custom_call.1} parent=1 // loop_pre_header
      _
    $region3: #{tpu_custom_call.1} parent=1 // loop_header
      %s17 = sphi 0, %s21
      %p18 = scmp.ge.s32.totalorder %s17, 4
      %s24 = sphi 0, %s36
      %s25 = sphi 0, %s32
      %s26 = sphi 0, %s24
      %s27 = sphi 0, %s25
      %s28 = sphi 0, %s26
      %s29 = sphi 0, %s27
      %s41 = sphi 0, %s43
      %s44 = sphi 0, %s41
      %s45 = sphi 0, %s44
      %s61 = sphi 0, %s45
      %s65 = sphi 0, %s65
      %s67 = sphi 0, %s65
      %s68 = sphi 0, %s67
      %s82 = sphi 0, %s68
      %s86 = sphi 0, %s86
      %s88 = sphi 0, %s86
      %s89 = sphi 0, %s88
      %s103 = sphi 0, %s89
      %s107 = sphi 0, %s107
      %s109 = sphi 0, %s107
      %s110 = sphi 0, %s109
      %s124 = sphi 0, %s110
      %s128 = sphi 0, %s128
      %s130 = sphi 0, %s128
      %s131 = sphi 0, %s130
      %s145 = sphi 0, %s131
      %s153 = sphi 0, %s155
      %s156 = sphi 0, %s153
      %s157 = sphi 0, %s156
      %s173 = sphi 0, %s157
    $region4: #{tpu_custom_call.1} parent=1 // loop_header_branch
      %20 = sbr.rel (%p18) target = $region8
    $region5: #{tpu_custom_call.1} parent=1 // loop_body
      %s22 = ssub.s32 %s17, 1
      %s23 = ssub.s32 %s17, 2
      %s30 = sadd.s32 1, %s25
      %p31 = scmp.ge.s32.totalorder %s30, 1
      %s32 = scalar_select %p31, 0, %s30
      %s33 = sadd.s32 1, %s24
      %s34 = scalar_select %p31, %s33, %s24
      %p35 = scmp.ge.s32.totalorder %s34, 2
      %s36 = scalar_select %p35, 0, %s34
      %s37 = ssub.s32 %s24, %s36
      %s38 = ssub.s32 %s25, %s32
      %s39 = sor.u32 %s37, %s38
      %p40 = scmp.eq.s32.totalorder %s39, 0
      %s42 = sadd.s32 %s41, 1
      %s43 = scalar_select %p40, %s41, %s42
      %p46 = pneg %p40
      %p47 = scmp.eq.s32.totalorder %s17, 1
      %p48 = por %p46, %p47
      %p49 = scmp.ne.s32.totalorder %s41, %s44
      %p50 = scmp.eq.s32.totalorder %s17, 0
      %p51 = por %p49, %p50
      %p52 = scmp.ne.s32.totalorder %s41, %s44
      %p53 = scmp.eq.s32.totalorder %s22, 1
      %p54 = por %p52, %p53
      %p55 = scmp.ne.s32.totalorder %s44, %s45
      %p56 = scmp.eq.s32.totalorder %s22, 0
      %p57 = por %p55, %p56
      %p58 = scmp.ne.s32.totalorder %s44, %s45
      %p59 = scmp.eq.s32.totalorder %s23, 1
      %p60 = por %p58, %p59
      %p62 = scmp.ne.s32.totalorder %s45, %s61
      %p63 = scmp.eq.s32.totalorder %s23, 0
      %p64 = por %p62, %p63
      %s66 = sadd.s32 %s65, 1
      %p69 = scmp.eq.s32.totalorder %s17, 1
      %p70 = scmp.ne.s32.totalorder %s65, %s67
      %p71 = scmp.eq.s32.totalorder %s17, 0
      %p72 = por %p70, %p71
      %p73 = scmp.ne.s32.totalorder %s65, %s67
      %p74 = scmp.eq.s32.totalorder %s22, 1
      %p75 = por %p73, %p74
      %p76 = scmp.ne.s32.totalorder %s67, %s68
      %p77 = scmp.eq.s32.totalorder %s22, 0
      %p78 = por %p76, %p77
      %p79 = scmp.ne.s32.totalorder %s67, %s68
      %p80 = scmp.eq.s32.totalorder %s23, 1
      %p81 = por %p79, %p80
      %p83 = scmp.ne.s32.totalorder %s68, %s82
      %p84 = scmp.eq.s32.totalorder %s23, 0
      %p85 = por %p83, %p84
      %s87 = sadd.s32 %s86, 1
      %p90 = scmp.eq.s32.totalorder %s17, 1
      %p91 = scmp.ne.s32.totalorder %s86, %s88
      %p92 = scmp.eq.s32.totalorder %s17, 0
      %p93 = por %p91, %p92
      %p94 = scmp.ne.s32.totalorder %s86, %s88
      %p95 = scmp.eq.s32.totalorder %s22, 1
      %p96 = por %p94, %p95
      %p97 = scmp.ne.s32.totalorder %s88, %s89
      %p98 = scmp.eq.s32.totalorder %s22, 0
      %p99 = por %p97, %p98
      %p100 = scmp.ne.s32.totalorder %s88, %s89
      %p101 = scmp.eq.s32.totalorder %s23, 1
      %p102 = por %p100, %p101
      %p104 = scmp.ne.s32.totalorder %s89, %s103
      %p105 = scmp.eq.s32.totalorder %s23, 0
      %p106 = por %p104, %p105
      %s108 = sadd.s32 %s107, 1
      %p111 = scmp.eq.s32.totalorder %s17, 1
      %p112 = scmp.ne.s32.totalorder %s107, %s109
      %p113 = scmp.eq.s32.totalorder %s17, 0
      %p114 = por %p112, %p113
      %p115 = scmp.ne.s32.totalorder %s107, %s109
      %p116 = scmp.eq.s32.totalorder %s22, 1
      %p117 = por %p115, %p116
      %p118 = scmp.ne.s32.totalorder %s109, %s110
      %p119 = scmp.eq.s32.totalorder %s22, 0
      %p120 = por %p118, %p119
      %p121 = scmp.ne.s32.totalorder %s109, %s110
      %p122 = scmp.eq.s32.totalorder %s23, 1
      %p123 = por %p121, %p122
      %p125 = scmp.ne.s32.totalorder %s110, %s124
      %p126 = scmp.eq.s32.totalorder %s23, 0
      %p127 = por %p125, %p126
      %s129 = sadd.s32 %s128, 1
      %p132 = scmp.eq.s32.totalorder %s17, 1
      %p133 = scmp.ne.s32.totalorder %s128, %s130
      %p134 = scmp.eq.s32.totalorder %s17, 0
      %p135 = por %p133, %p134
      %p136 = scmp.ne.s32.totalorder %s128, %s130
      %p137 = scmp.eq.s32.totalorder %s22, 1
      %p138 = por %p136, %p137
      %p139 = scmp.ne.s32.totalorder %s130, %s131
      %p140 = scmp.eq.s32.totalorder %s22, 0
      %p141 = por %p139, %p140
      %p142 = scmp.ne.s32.totalorder %s130, %s131
      %p143 = scmp.eq.s32.totalorder %s23, 1
      %p144 = por %p142, %p143
      %p146 = scmp.ne.s32.totalorder %s131, %s145
      %p147 = scmp.eq.s32.totalorder %s23, 0
      %p148 = por %p146, %p147
      %s149 = ssub.s32 %s24, %s36
      %s150 = ssub.s32 %s25, %s32
      %s151 = sor.u32 %s149, %s150
      %p152 = scmp.eq.s32.totalorder %s151, 0
      %s154 = sadd.s32 %s153, 1
      %s155 = scalar_select %p152, %s153, %s154
      %p158 = pneg %p152
      %p159 = scmp.eq.s32.totalorder %s17, 1
      %p160 = por %p158, %p159
      %p161 = scmp.ne.s32.totalorder %s153, %s156
      %p162 = scmp.eq.s32.totalorder %s17, 0
      %p163 = por %p161, %p162
      %p164 = scmp.ne.s32.totalorder %s153, %s156
      %p165 = scmp.eq.s32.totalorder %s22, 1
      %p166 = por %p164, %p165
      %p167 = scmp.ne.s32.totalorder %s156, %s157
      %p168 = scmp.eq.s32.totalorder %s22, 0
      %p169 = por %p167, %p168
      %p170 = scmp.ne.s32.totalorder %s156, %s157
      %p171 = scmp.eq.s32.totalorder %s23, 1
      %p172 = por %p170, %p171
      %p174 = scmp.ne.s32.totalorder %s157, %s173
      %p175 = scmp.eq.s32.totalorder %s23, 0
      %p176 = por %p174, %p175
      %p177 = scmp.le.s32.totalorder 1, %s17
      %p178 = scmp.lt.s32.totalorder %s17, 3
      %p179 = pnand %p177, %p178
      %p180 = pneg %p179
      // Predicated region
      $region9: #{tpu_custom_call.1} parent=5 // pred_check
        _
      $region10: #{tpu_custom_call.1} parent=5 // pred_check_branch
        %182 = sbr.rel (%p179) target = $region12
      $region11: #{tpu_custom_call.1} parent=5 // pred_region
        %s183 = ssub.s32 %s17, 1
        // Predicated region
        $region13: #{tpu_custom_call.1} parent=11 // pred_check
          %p184 = pneg %p78
        $region14: #{tpu_custom_call.1} parent=11 // pred_check_branch
          %186 = sbr.rel (%p184) target = $region16
        $region15: #{tpu_custom_call.1} parent=11 // pred_region
          _
        $region16: #{tpu_custom_call.1} parent=11 // pred_fallthru
          _
        // Predicated region
        $region17: #{tpu_custom_call.1} parent=11 // pred_check
          %p187 = pneg %p99
        $region18: #{tpu_custom_call.1} parent=11 // pred_check_branch
          %189 = sbr.rel (%p187) target = $region20
        $region19: #{tpu_custom_call.1} parent=11 // pred_region
          _
        $region20: #{tpu_custom_call.1} parent=11 // pred_fallthru
          _
        // Predicated region
        $region21: #{tpu_custom_call.1} parent=11 // pred_check
          %p190 = pneg %p120
        $region22: #{tpu_custom_call.1} parent=11 // pred_check_branch
          %192 = sbr.rel (%p190) target = $region24
        $region23: #{tpu_custom_call.1} parent=11 // pred_region
          _
        $region24: #{tpu_custom_call.1} parent=11 // pred_fallthru
          _
        // Predicated region
        $region25: #{tpu_custom_call.1} parent=11 // pred_check
          %p193 = pneg %p141
        $region26: #{tpu_custom_call.1} parent=11 // pred_check_branch
          %195 = sbr.rel (%p193) target = $region28
        $region27: #{tpu_custom_call.1} parent=11 // pred_region
          _
        $region28: #{tpu_custom_call.1} parent=11 // pred_fallthru
          _
      $region12: #{tpu_custom_call.1} parent=5 // pred_fallthru
        _
      %p196 = scmp.lt.s32.totalorder %s17, 2
      // Predicated region
      $region29: #{tpu_custom_call.1} parent=5 // pred_check
        %p197 = pneg %p196
      $region30: #{tpu_custom_call.1} parent=5 // pred_check_branch
        %199 = sbr.rel (%p197) target = $region32
      $region31: #{tpu_custom_call.1} parent=5 // pred_region
        // Predicated region
        $region33: #{tpu_custom_call.1} parent=31 // pred_check
          %p200 = pneg %p51
        $region34: #{tpu_custom_call.1} parent=31 // pred_check_branch
          %202 = sbr.rel (%p200) target = $region36
        $region35: #{tpu_custom_call.1} parent=31 // pred_region
          %s203 = sand.u32 %s41, 1
          %s204 = scalar_lea.sflag [#allocation3], %s203
          %s205 = sand.u32 %s41, 1
          %s206 = smul.addr %s205, 16
          %s207 = scalar_lea.vmem [#allocation2], %s206
          %s208 = smul.u32 2, %s25
          %s210 = ssub.s32 256, 256
          %211 = vsyncadd %s204, %s210
          %s212 = smul.addr %s24, 2
          %s213 = sadd.s32 %s208, %s212
          %s214 = smul.addr %s213, 128
          %s215 = scalar_lea.hbm %s0, %s214
          %s217 = sshll.u32 %s207, 4
          %s218 = int_to_ptr.vmem [resolvable:$true] %s217
          %220 = dma.hbm_to_vmem [thread:$0]  %s215, 256, %s218, %s204
        $region36: #{tpu_custom_call.1} parent=31 // pred_fallthru
          _
      $region32: #{tpu_custom_call.1} parent=5 // pred_fallthru
        _
      %p221 = scmp.le.s32.totalorder 1, %s17
      %p222 = scmp.lt.s32.totalorder %s17, 3
      %p223 = pnand %p221, %p222
      %p224 = pneg %p223
      // Predicated region
      $region37: #{tpu_custom_call.1} parent=5 // pred_check
        _
      $region38: #{tpu_custom_call.1} parent=5 // pred_check_branch
        %226 = sbr.rel (%p223) target = $region40
      $region39: #{tpu_custom_call.1} parent=5 // pred_region
        %s227 = ssub.s32 %s17, 1
        %s228 = sand.u32 %s44, 1
        %s229 = scalar_lea.sflag [#allocation3], %s228
        %s230 = sand.u32 %s44, 1
        %s231 = smul.addr %s230, 16
        %s232 = scalar_lea.vmem [#allocation2], %s231
        // Predicated region
        $region41: #{tpu_custom_call.1} parent=39 // pred_check
          %p233 = pneg %p57
        $region42: #{tpu_custom_call.1} parent=39 // pred_check_branch
          %235 = sbr.rel (%p233) target = $region44
        $region43: #{tpu_custom_call.1} parent=39 // pred_region
          %236 = dma.done %s229, 256
        $region44: #{tpu_custom_call.1} parent=39 // pred_fallthru
          _
        %s237 = sand.u32 %s44, 1
        %s238 = scalar_lea.sflag [#allocation3], %s237
        %s239 = sand.u32 %s44, 1
        %s240 = smul.addr %s239, 16
        %s241 = scalar_lea.vmem [#allocation2], %s240
        %p242 = pneg %p57
        %p243 = pneg %p54
        %p244 = pneg %p78
        %p245 = pneg %p75
        %p246 = pneg %p99
        %p247 = pneg %p96
        %p248 = pneg %p120
        %p249 = pneg %p117
        %p250 = pneg %p141
        %p251 = pneg %p138
        %p252 = pneg %p169
        %p253 = pneg %p166
        %s254 = sand.u32 %s156, 1
        %s255 = scalar_lea.sflag [#allocation4], %s254
        %s256 = sand.u32 %s156, 1
        %s257 = smul.addr %s256, 8
        %s258 = scalar_lea.vmem [#allocation5], %s257
        %s259 = smul.u32 2, %s27
        %s260 = smul.u32 2, %s27
        %v261 = vld [vmem:[%s1] sm:$0xff]
        %v262 = vld [vmem:[%s2] sm:$0xff]
        %v263 = vld [vmem:[%s3] sm:$0xf]
        %v264 = vld [vmem:[%s4] sm:$0xf]
        %v265 = vld [vmem:[%s232] sm:$0xff]
        %v266 = vld [vmem:[%s232 + $0x8] sm:$0xff]
        %268 = vset.pattern.permute.xlu0 0
        %269 = vperm.xlu0 %268, %v262
        %v270 = vpop.permute.xlu0 %269
        %vm272 = vcmask 64512
        %v274 = vsel %vm272, %v261, 0
        %276 = vmatprep.subr.mxu0 %v266
        %277 = vmatpush1.msra.mxu0 %v265
        %278 = vmatprep.subr.mxu0 0.0
        %279 = vmatpush1.msra.mxu0 0.0
        %280 = vmatprep.subr.mxu0 0.0
        %281 = vmatpush1.msra.mxu0 0.0
        %282 = vmatprep.subr.mxu0 0.0
        %283 = vmatpush1.msra.mxu0 0.0
        %284 = vmatprep.subr.mxu0 0.0
        %285 = vmatpush1.msra.mxu0 0.0
        %286 = vmatprep.subr.mxu0 0.0
        %287 = vmatpush1.msra.mxu0 0.0
        %288 = vmatprep.subr.mxu0 0.0
        %289 = vmatpush1.msra.mxu0 0.0
        %290 = vmatprep.subr.mxu0 0.0
        %291 = vmatpush1.msra.mxu0 0.0
        %292 = vmatprep.subr.mxu0 0.0
        %293 = vmatpush1.msra.mxu0 0.0
        %294 = vmatprep.subr.mxu0 0.0
        %295 = vmatpush1.msra.mxu0 0.0
        %296 = vmatprep.subr.mxu0 0.0
        %297 = vmatpush1.msra.mxu0 0.0
        %298 = vmatprep.subr.mxu0 0.0
        %299 = vmatpush1.msra.mxu0 0.0
        %300 = vmatprep.subr.mxu0 0.0
        %301 = vmatpush1.msra.mxu0 0.0
        %302 = vmatprep.subr.mxu0 0.0
        %303 = vmatpush1.msra.mxu0 0.0
        %304 = vmatprep.subr.mxu0 0.0
        %305 = vmatpush1.msra.mxu0 0.0
        %306 = vmatprep.subr.mxu0 0.0
        %307 = vmatpush1.msra.mxu0 0.0
        %308 = vmatprep.subr.mxu0 0.0
        %309 = vmatpush1.msra.mxu0 0.0
        %310 = vmatprep.subr.mxu0 0.0
        %311 = vmatpush1.msra.mxu0 0.0
        %312 = vmatprep.subr.mxu0 0.0
        %313 = vmatpush1.msra.mxu0 0.0
        %314 = vmatprep.subr.mxu0 0.0
        %315 = vmatpush1.msra.mxu0 0.0
        %316 = vmatprep.subr.mxu0 0.0
        %317 = vmatpush1.msra.mxu0 0.0
        %318 = vmatprep.subr.mxu0 0.0
        %319 = vmatpush1.msra.mxu0 0.0
        %320 = vmatprep.subr.mxu0 0.0
        %321 = vmatpush1.msra.mxu0 0.0
        %322 = vmatprep.subr.mxu0 0.0
        %323 = vmatpush1.msra.mxu0 0.0
        %324 = vmatprep.subr.mxu0 0.0
        %325 = vmatpush1.msra.mxu0 0.0
        %326 = vmatprep.subr.mxu0 0.0
        %327 = vmatpush1.msra.mxu0 0.0
        %328 = vmatprep.subr.mxu0 0.0
        %329 = vmatpush1.msra.mxu0 0.0
        %330 = vmatprep.subr.mxu0 0.0
        %331 = vmatpush1.msra.mxu0 0.0
        %332 = vmatprep.subr.mxu0 0.0
        %333 = vmatpush1.msra.mxu0 0.0
        %334 = vmatprep.subr.mxu0 0.0
        %335 = vmatpush1.msra.mxu0 0.0
        %336 = vmatprep.subr.mxu0 0.0
        %337 = vmatpush1.msra.mxu0 0.0
        %338 = vmatprep.subr.mxu0 0.0
        %339 = vmatpush1.msra.mxu0 0.0
        %340 = vmatprep.mubr.f32.mxu0 0.0
        %341 = vmatmul.mubr.f32.gmra.mrb[0].mxu0 %v274
        %v342 = vpop.f32.mrb[0].mxu0
        %v343 = vadd.f32 %v270, %v342
        %v344 = vpop.f32.mrb[0].mxu0
        %v345 = vadd.f32 %v270, %v344
        %346 = vdwg.mxu0
        %v347 = vmax.f32 %v343, 0.0
        %v348 = vmax.f32 %v345, 0.0
        %350 = vset.pattern.permute.xlu0 0
        %351 = vperm.xlu0 %350, %v264
        %v352 = vpop.permute.xlu0 %351
        %v355 = vsel %vm272, %v263, 0
        %357 = vmatprep.subr.mxu0 %v348
        %358 = vmatpush1.msra.mxu0 %v347
        %359 = vmatprep.subr.mxu0 0.0
        %360 = vmatpush1.msra.mxu0 0.0
        %361 = vmatprep.subr.mxu0 0.0
        %362 = vmatpush1.msra.mxu0 0.0
        %363 = vmatprep.subr.mxu0 0.0
        %364 = vmatpush1.msra.mxu0 0.0
        %365 = vmatprep.subr.mxu0 0.0
        %366 = vmatpush1.msra.mxu0 0.0
        %367 = vmatprep.subr.mxu0 0.0
        %368 = vmatpush1.msra.mxu0 0.0
        %369 = vmatprep.subr.mxu0 0.0
        %370 = vmatpush1.msra.mxu0 0.0
        %371 = vmatprep.subr.mxu0 0.0
        %372 = vmatpush1.msra.mxu0 0.0
        %373 = vmatprep.subr.mxu0 0.0
        %374 = vmatpush1.msra.mxu0 0.0
        %375 = vmatprep.subr.mxu0 0.0
        %376 = vmatpush1.msra.mxu0 0.0
        %377 = vmatprep.subr.mxu0 0.0
        %378 = vmatpush1.msra.mxu0 0.0
        %379 = vmatprep.subr.mxu0 0.0
        %380 = vmatpush1.msra.mxu0 0.0
        %381 = vmatprep.subr.mxu0 0.0
        %382 = vmatpush1.msra.mxu0 0.0
        %383 = vmatprep.subr.mxu0 0.0
        %384 = vmatpush1.msra.mxu0 0.0
        %385 = vmatprep.subr.mxu0 0.0
        %386 = vmatpush1.msra.mxu0 0.0
        %387 = vmatprep.subr.mxu0 0.0
        %388 = vmatpush1.msra.mxu0 0.0
        %389 = vmatprep.subr.mxu0 0.0
        %390 = vmatpush1.msra.mxu0 0.0
        %391 = vmatprep.subr.mxu0 0.0
        %392 = vmatpush1.msra.mxu0 0.0
        %393 = vmatprep.subr.mxu0 0.0
        %394 = vmatpush1.msra.mxu0 0.0
        %395 = vmatprep.subr.mxu0 0.0
        %396 = vmatpush1.msra.mxu0 0.0
        %397 = vmatprep.subr.mxu0 0.0
        %398 = vmatpush1.msra.mxu0 0.0
        %399 = vmatprep.subr.mxu0 0.0
        %400 = vmatpush1.msra.mxu0 0.0
        %401 = vmatprep.subr.mxu0 0.0
        %402 = vmatpush1.msra.mxu0 0.0
        %403 = vmatprep.subr.mxu0 0.0
        %404 = vmatpush1.msra.mxu0 0.0
        %405 = vmatprep.subr.mxu0 0.0
        %406 = vmatpush1.msra.mxu0 0.0
        %407 = vmatprep.subr.mxu0 0.0
        %408 = vmatpush1.msra.mxu0 0.0
        %409 = vmatprep.subr.mxu0 0.0
        %410 = vmatpush1.msra.mxu0 0.0
        %411 = vmatprep.subr.mxu0 0.0
        %412 = vmatpush1.msra.mxu0 0.0
        %413 = vmatprep.subr.mxu0 0.0
        %414 = vmatpush1.msra.mxu0 0.0
        %415 = vmatprep.subr.mxu0 0.0
        %416 = vmatpush1.msra.mxu0 0.0
        %417 = vmatprep.subr.mxu0 0.0
        %418 = vmatpush1.msra.mxu0 0.0
        %419 = vmatprep.subr.mxu0 0.0
        %420 = vmatpush1.msra.mxu0 0.0
        %421 = vmatprep.mubr.f32.mxu0 0.0
        %422 = vmatmul.mubr.f32.gmra.mrb[0].mxu0 %v355
        %v423 = vpop.f32.mrb[0].mxu0
        %v424 = vadd.f32 %v352, %v423
        %v425 = vpop.f32.mrb[0].mxu0
        %v426 = vadd.f32 %v352, %v425
        %427 = vdwg.mxu0
        %v430 = vcombine.low %v424, %v426
        %432 = vst [vmem:[%s258] sm:$0xff] %v430
        %s433 = sand.u32 %s156, 1
        %s434 = scalar_lea.sflag [#allocation4], %s433
        %s435 = sand.u32 %s156, 1
        %s436 = smul.addr %s435, 8
        %s437 = scalar_lea.vmem [#allocation5], %s436
        // Predicated region
        $region45: #{tpu_custom_call.1} parent=39 // pred_check
          %p438 = pneg %p166
        $region46: #{tpu_custom_call.1} parent=39 // pred_check_branch
          %440 = sbr.rel (%p438) target = $region48
        $region47: #{tpu_custom_call.1} parent=39 // pred_region
          %s441 = smul.u32 2, %s27
          %s443 = ssub.s32 128, 128
          %444 = vsyncadd %s434, %s443
          %s445 = smul.addr %s26, 2
          %s446 = sadd.s32 %s441, %s445
          %s447 = smul.addr %s446, 64
          %s448 = scalar_lea.hbm %s5, %s447
          %s450 = sshll.u32 %s437, 4
          %s451 = int_to_ptr.vmem [resolvable:$true] %s450
          %453 = dma.vmem_to_hbm [thread:$0]  %s451, 128, %s448, %s434
        $region48: #{tpu_custom_call.1} parent=39 // pred_fallthru
          _
      $region40: #{tpu_custom_call.1} parent=5 // pred_fallthru
        _
      %p454 = scmp.le.s32.totalorder 2, %s17
      // Predicated region
      $region49: #{tpu_custom_call.1} parent=5 // pred_check
        %p455 = pneg %p454
      $region50: #{tpu_custom_call.1} parent=5 // pred_check_branch
        %457 = sbr.rel (%p455) target = $region52
      $region51: #{tpu_custom_call.1} parent=5 // pred_region
        %s458 = ssub.s32 %s17, 2
        // Predicated region
        $region53: #{tpu_custom_call.1} parent=51 // pred_check
          %p459 = pneg %p172
        $region54: #{tpu_custom_call.1} parent=51 // pred_check_branch
          %461 = sbr.rel (%p459) target = $region56
        $region55: #{tpu_custom_call.1} parent=51 // pred_region
          %s462 = sand.u32 %s157, 1
          %s463 = scalar_lea.sflag [#allocation4], %s462
          %s464 = sand.u32 %s157, 1
          %s465 = smul.addr %s464, 8
          %s466 = scalar_lea.vmem [#allocation5], %s465
          %467 = dma.done %s463, 128
        $region56: #{tpu_custom_call.1} parent=51 // pred_fallthru
          _
      $region52: #{tpu_custom_call.1} parent=5 // pred_fallthru
        _
    $region6: #{tpu_custom_call.1} parent=1 // loop_footer
      %s21 = sadd.s32 1, %s17
    $region7: #{tpu_custom_call.1} parent=1 // loop_footer_branch
      %16 = sbr.rel target = $region3
    $region8: #{tpu_custom_call.1} parent=1 // loop_exit
      _
    %468 = vsyncpa [#allocation3], 1
    %s469 = scalar_lea.sflag [#allocation3], 1
    %470 = vsyncpa %s469, 1
    %471 = vsyncpa [#allocation4], 1
    %s472 = scalar_lea.sflag [#allocation4], 1
    %473 = vsyncpa %s472, 1

</llo_original>
